<compile_context>
chip_gen: v6e
topology: v6e:2x2x1
jax: 0.10.0
libtpu: 0.0.40
codegen_flags: <defaults>
</compile_context>

<pallas_src>
import jax
import jax.numpy as jnp
from jax.experimental import pallas as pl
from jax.experimental.pallas import tpu as pltpu


def _make_pinball_kernel(quantiles):
    qvals = [float(q) for q in quantiles]

    def kernel(preds_ref, tgt_ref, out_ref, acc_ref):
        i = pl.program_id(1)                      # reduction step (sample axis)

        @pl.when(i == 0)
        def _():
            acc_ref[...] = jnp.zeros_like(acc_ref)

        tgt = tgt_ref[...]                        # (8, Lc), fully dense
        s = jnp.zeros_like(tgt)
        for qi, qv in enumerate(qvals):           # unrolled: Q is small & static
            e = tgt - preds_ref[qi]               # (8, Lc)
            # pinball: max((q-1)*e, q*e) == q*e + max(-e, 0)  (one fewer vmul)
            s = s + (qv * e + jnp.maximum(-e, 0.0))
        acc_ref[...] += s                         # pure VPU adds, lanes preserved

        @pl.when(i == pl.num_programs(1) - 1)
        def _():
            total = jnp.sum(acc_ref[...])         # single cross-lane/XLU reduce
            out_ref[...] = jnp.broadcast_to(total.reshape(1, 1), out_ref.shape)

    return kernel


def pinball_l1_loss(preds, target, quantiles, params_flat, Lambda=1.0,
                    lane_chunk_max=4096, num_splits=1):
    """JAX/Pallas equivalent of pinball_l1_loss.forward(preds, target).

    preds:       (N, Q) float
    target:      (N, 1) float (only column 0 used, as in the torch module)
    params_flat: flattened model parameters (for the L1 term)
    num_splits:  1 for v5e/v6e (single TensorCore), 2 for v7x megacore.
    """
    n, nq = preds.shape
    assert target.shape[0] == n
    assert lane_chunk_max % 128 == 0 and num_splits >= 1

    # ---- tile sizing: 8*Lc samples per grid step, clamped for small N ------
    samples_per_split = -(-n // num_splits)          # cdiv
    chunk_max = 8 * lane_chunk_max                   # samples per grid step
    if samples_per_split <= chunk_max:
        chunk = max(1024, ((samples_per_split + 1023) // 1024) * 1024)
        steps_per_split = 1
    else:
        chunk = chunk_max
        steps_per_split = -(-samples_per_split // chunk)
    lc = chunk // 8                                  # lane width (multiple of 128)
    n_pad = num_splits * steps_per_split * chunk
    pad = n_pad - n

    # ---- relayout: sublane+lane dense 3-D packing ---------------------------
    # One fused transpose+pad pass over preds; the reshape is a free minor-dim
    # split.  Zero padding is exact for this loss.
    # TODO(synk): for very large N, mask the ragged tail in-kernel instead of
    # padding to save one HBM write pass over preds.
    preds_t = jnp.pad(jnp.transpose(preds.astype(jnp.float32)),
                      ((0, 0), (0, pad)))                       # (Q, N_pad)
    preds_p = preds_t.reshape(nq, n_pad // lc, lc)              # (Q, R, Lc)
    tgt_p = jnp.pad(target[:, 0].astype(jnp.float32),
                    (0, pad)).reshape(n_pad // lc, lc)          # (R, Lc)

    kernel = _make_pinball_kernel(quantiles)
    grid = (num_splits, steps_per_split)

    # VMEM budget: double-buffered preds+target blocks + accumulator + output,
    # with 2x headroom (explicit limit keeps v7x's smaller scoped VMEM honest).
    need = 4 * (2 * (nq * 8 * lc + 8 * lc) + 8 * lc + 2 * 8 * 128)
    vmem_limit = int(min(32 * 1024 * 1024, max(8 * 1024 * 1024, 2 * need)))

    out = pl.pallas_call(
        kernel,
        out_shape=jax.ShapeDtypeStruct((1, 128 * num_splits), jnp.float32),
        grid_spec=pltpu.PrefetchScalarGridSpec(
            num_scalar_prefetch=0,
            grid=grid,
            in_specs=[
                pl.BlockSpec((nq, 8, lc),
                             lambda c, i: (0, c * steps_per_split + i, 0)),
                pl.BlockSpec((8, lc),
                             lambda c, i: (c * steps_per_split + i, 0)),
            ],
            out_specs=pl.BlockSpec((1, 128), lambda c, i: (0, c)),
            scratch_shapes=[pltpu.VMEM((8, lc), jnp.float32)],
        ),
        compiler_params=pltpu.CompilerParams(
            dimension_semantics=("parallel", "arbitrary"),
            vmem_limit_bytes=vmem_limit),
    )(preds_p, tgt_p)

    # One partial per split (each 128-lane block is a broadcast of its scalar).
    partials = out.reshape(num_splits, 128)[:, 0]
    loss_pinball = jnp.sum(partials) * (1.0 / n)

    # L1 over model parameters in plain JAX: keeps VMEM free of a resident
    # params block and counts the term exactly once.
    l1 = jnp.sum(jnp.abs(jnp.asarray(params_flat, jnp.float32)))
    return loss_pinball + jnp.float32(Lambda) * l1


def _reference(preds, target, quantiles, params_flat, Lambda=1.0):
    """Pure-jnp reference mirroring the PyTorch forward exactly."""
    losses = []
    for i, q in enumerate(quantiles):
        errors = target[:, 0] - preds[:, i]
        losses.append(jnp.maximum((q - 1.0) * errors, q * errors)[:, None])
    loss_pinball = jnp.mean(jnp.sum(jnp.concatenate(losses, axis=1), axis=1))
    l1 = jnp.sum(jnp.abs(params_flat))
    return loss_pinball + Lambda * l1


if __name__ == "__main__":
    key = jax.random.PRNGKey(0)
    k1, k2, k3, k4, k5, k6, k7, k8 = jax.random.split(key, 8)

    # ---- small case consistent with the module's forward -------------------
    N = 64
    quantiles = [0.1, 0.5, 0.9]          # Q = 3
    Q = len(quantiles)
    Lambda = 1.0

    preds = jax.random.normal(k1, (N, Q), dtype=jnp.float32)
    target = jax.random.normal(k2, (N, 1), dtype=jnp.float32)

    # Deterministic synthetic "model" parameters (small MLP: 16 -> 32 -> Q).
    W1 = jax.random.normal(k3, (32, 16), dtype=jnp.float32) * 0.1
    b1 = jax.random.normal(k4, (32,), dtype=jnp.float32) * 0.1
    W2 = jax.random.normal(k5, (Q, 32), dtype=jnp.float32) * 0.1
    b2 = jax.random.normal(k6, (Q,), dtype=jnp.float32) * 0.1
    params_flat = jnp.concatenate(
        [W1.reshape(-1), b1.reshape(-1), W2.reshape(-1), b2.reshape(-1)]
    )

    loss = pinball_l1_loss(preds, target, quantiles, params_flat, Lambda)
    loss = jax.block_until_ready(loss)
    ref = _reference(preds, target, quantiles, params_flat, Lambda)
    assert jnp.allclose(loss, ref, rtol=1e-5, atol=1e-5), (loss, ref)

    # ---- larger case: exercises multi-step streaming + 2 splits + padding ---
    N2 = 5000
    quantiles2 = [0.05, 0.25, 0.5, 0.75, 0.95]
    preds2 = jax.random.normal(k7, (N2, len(quantiles2)), dtype=jnp.float32)
    target2 = jax.random.normal(k8, (N2, 1), dtype=jnp.float32)
    loss2 = pinball_l1_loss(preds2, target2, quantiles2, params_flat, Lambda,
                            lane_chunk_max=128, num_splits=2)
    loss2 = jax.block_until_ready(loss2)
    ref2 = _reference(preds2, target2, quantiles2, params_flat, Lambda)
    assert jnp.allclose(loss2, ref2, rtol=1e-5, atol=1e-4), (loss2, ref2)

    print("KERNEL_OK")
</pallas_src>

<mosaic_0001>
module attributes {stable_mosaic.version = 11 : i64} {
  func.func @kernel(%arg0: i32, %arg1: i32, %arg2: memref<3x8x128xf32, #tpu.memory_space<vmem>>, %arg3: memref<8x128xf32, #tpu.memory_space<vmem>>, %arg4: memref<1x128xf32, #tpu.memory_space<vmem>>, %arg5: memref<8x128xf32, #tpu.memory_space<vmem>>) attributes {dimension_semantics = [#tpu.dimension_semantics<parallel>, #tpu.dimension_semantics<arbitrary>], iteration_bounds = array<i64: 1, 1>, scalar_prefetch = 0 : i64, scratch_operands = 1 : i64, tpu.core_type = #tpu.core_type<tc>, window_params = [{transform_indices = @transform_0, window_bounds = array<i64: 3, 8, 128>}, {transform_indices = @transform_1, window_bounds = array<i64: 8, 128>}, {transform_indices = @transform_2, window_bounds = array<i64: 1, 128>}]} {
    %c0_i32 = arith.constant 0 : i32
    %0 = arith.cmpi eq, %arg1, %c0_i32 : i32
    %1 = arith.extui %0 : i1 to i32
    %c0_i32_0 = arith.constant 0 : i32
    %2 = arith.cmpi ne, %1, %c0_i32_0 : i32
    scf.if %2 {
      %cst_24 = arith.constant 0.000000e+00 : f32
      %44 = vector.broadcast %cst_24 : f32 to vector<8x128xf32>
      %c0_25 = arith.constant 0 : index
      %c0_26 = arith.constant 0 : index
      %45 = vector.load %arg5[%c0_25, %c0_26] : memref<8x128xf32, #tpu.memory_space<vmem>>, vector<8x128xf32>
      tpu.vector_store %arg5[%c0_25, %c0_26], %44 {strides = array<i32>} : memref<8x128xf32, #tpu.memory_space<vmem>>, vector<8x128xf32>,
    } else {
    }
    %c0 = arith.constant 0 : index
    %c0_1 = arith.constant 0 : index
    %3 = vector.load %arg3[%c0, %c0_1] : memref<8x128xf32, #tpu.memory_space<vmem>>, vector<8x128xf32>
    %cst = arith.constant 0.000000e+00 : f32
    %4 = vector.broadcast %cst : f32 to vector<8x128xf32>
    %c0_2 = arith.constant 0 : index
    %c0_3 = arith.constant 0 : index
    %c0_4 = arith.constant 0 : index
    %5 = vector.load %arg2[%c0_2, %c0_3, %c0_4] : memref<3x8x128xf32, #tpu.memory_space<vmem>>, vector<1x8x128xf32>
    %6 = vector.shape_cast %5 : vector<1x8x128xf32> to vector<8x128xf32>
    %7 = arith.subf %3, %6 : vector<8x128xf32>
    %cst_5 = arith.constant 1.000000e-01 : f32
    %8 = vector.broadcast %cst_5 : f32 to vector<8x128xf32>
    %9 = arith.mulf %8, %7 : vector<8x128xf32>
    %cst_6 = arith.constant 0.000000e+00 : f32
    %10 = vector.broadcast %cst_6 : f32 to vector<8x128xf32>
    %11 = arith.subf %10, %7 : vector<8x128xf32>
    %cst_7 = arith.constant 0.000000e+00 : f32
    %12 = vector.broadcast %cst_7 : f32 to vector<8x128xf32>
    %13 = arith.maximumf %11, %12 : vector<8x128xf32>
    %14 = arith.addf %9, %13 : vector<8x128xf32>
    %15 = arith.addf %4, %14 : vector<8x128xf32>
    %c1 = arith.constant 1 : index
    %c0_8 = arith.constant 0 : index
    %c0_9 = arith.constant 0 : index
    %16 = vector.load %arg2[%c1, %c0_8, %c0_9] : memref<3x8x128xf32, #tpu.memory_space<vmem>>, vector<1x8x128xf32>
    %17 = vector.shape_cast %16 : vector<1x8x128xf32> to vector<8x128xf32>
    %18 = arith.subf %3, %17 : vector<8x128xf32>
    %cst_10 = arith.constant 5.000000e-01 : f32
    %19 = vector.broadcast %cst_10 : f32 to vector<8x128xf32>
    %20 = arith.mulf %19, %18 : vector<8x128xf32>
    %cst_11 = arith.constant 0.000000e+00 : f32
    %21 = vector.broadcast %cst_11 : f32 to vector<8x128xf32>
    %22 = arith.subf %21, %18 : vector<8x128xf32>
    %cst_12 = arith.constant 0.000000e+00 : f32
    %23 = vector.broadcast %cst_12 : f32 to vector<8x128xf32>
    %24 = arith.maximumf %22, %23 : vector<8x128xf32>
    %25 = arith.addf %20, %24 : vector<8x128xf32>
    %26 = arith.addf %15, %25 : vector<8x128xf32>
    %c2 = arith.constant 2 : index
    %c0_13 = arith.constant 0 : index
    %c0_14 = arith.constant 0 : index
    %27 = vector.load %arg2[%c2, %c0_13, %c0_14] : memref<3x8x128xf32, #tpu.memory_space<vmem>>, vector<1x8x128xf32>
    %28 = vector.shape_cast %27 : vector<1x8x128xf32> to vector<8x128xf32>
    %29 = arith.subf %3, %28 : vector<8x128xf32>
    %cst_15 = arith.constant 0.899999976 : f32
    %30 = vector.broadcast %cst_15 : f32 to vector<8x128xf32>
    %31 = arith.mulf %30, %29 : vector<8x128xf32>
    %cst_16 = arith.constant 0.000000e+00 : f32
    %32 = vector.broadcast %cst_16 : f32 to vector<8x128xf32>
    %33 = arith.subf %32, %29 : vector<8x128xf32>
    %cst_17 = arith.constant 0.000000e+00 : f32
    %34 = vector.broadcast %cst_17 : f32 to vector<8x128xf32>
    %35 = arith.maximumf %33, %34 : vector<8x128xf32>
    %36 = arith.addf %31, %35 : vector<8x128xf32>
    %37 = arith.addf %26, %36 : vector<8x128xf32>
    %c0_18 = arith.constant 0 : index
    %c0_19 = arith.constant 0 : index
    %38 = vector.load %arg5[%c0_18, %c0_19] : memref<8x128xf32, #tpu.memory_space<vmem>>, vector<8x128xf32>
    %39 = arith.addf %38, %37 : vector<8x128xf32>
    %c0_20 = arith.constant 0 : index
    %c0_21 = arith.constant 0 : index
    %40 = vector.load %arg5[%c0_20, %c0_21] : memref<8x128xf32, #tpu.memory_space<vmem>>, vector<8x128xf32>
    tpu.vector_store %arg5[%c0_20, %c0_21], %39 {strides = array<i32>} : memref<8x128xf32, #tpu.memory_space<vmem>>, vector<8x128xf32>,
    %c0_i32_22 = arith.constant 0 : i32
    %41 = arith.cmpi eq, %arg1, %c0_i32_22 : i32
    %42 = arith.extui %41 : i1 to i32
    %c0_i32_23 = arith.constant 0 : i32
    %43 = arith.cmpi ne, %42, %c0_i32_23 : i32
    scf.if %43 {
      %c0_24 = arith.constant 0 : index
      %c0_25 = arith.constant 0 : index
      %44 = vector.load %arg5[%c0_24, %c0_25] : memref<8x128xf32, #tpu.memory_space<vmem>>, vector<8x128xf32>
      %45 = vector.shape_cast %44 : vector<8x128xf32> to vector<1x8x128xf32>
      %cst_26 = arith.constant dense<0.000000e+00> : vector<1xf32>
      %46 = vector.multi_reduction <add>, %45, %cst_26 [1, 2] : vector<1x8x128xf32> to vector<1xf32>
      %47 = vector.shape_cast %46 : vector<1xf32> to vector<1x1x1xf32>
      %48 = vector.extract %47[0, 0, 0] : f32 from vector<1x1x1xf32>
      %49 = vector.broadcast %48 : f32 to vector<1x1xf32>
      %50 = vector.shape_cast %49 : vector<1x1xf32> to vector<1x1xf32>
      %51 = vector.broadcast %50 : vector<1x1xf32> to vector<1x128xf32>
      %c0_27 = arith.constant 0 : index
      %c0_28 = arith.constant 0 : index
      %52 = vector.load %arg4[%c0_27, %c0_28] : memref<1x128xf32, #tpu.memory_space<vmem>>, vector<1x128xf32>
      tpu.vector_store %arg4[%c0_27, %c0_28], %51 {strides = array<i32>} : memref<1x128xf32, #tpu.memory_space<vmem>>, vector<1x128xf32>,
    } else {
    }
    return
  }
  func.func @transform_0(%arg0: i32, %arg1: i32) -> (i32, i32, i32) {
    %c1_i32 = arith.constant 1 : i32
    %0 = arith.muli %arg0, %c1_i32 : i32
    %1 = arith.addi %0, %arg1 : i32
    %c0_i32 = arith.constant 0 : i32
    %c0_i32_0 = arith.constant 0 : i32
    %c0_i32_1 = arith.constant 0 : i32
    return %c0_i32, %1, %c0_i32_0 : i32, i32, i32
  }
  func.func @transform_1(%arg0: i32, %arg1: i32) -> (i32, i32) {
    %c1_i32 = arith.constant 1 : i32
    %0 = arith.muli %arg0, %c1_i32 : i32
    %1 = arith.addi %0, %arg1 : i32
    %c0_i32 = arith.constant 0 : i32
    %c0_i32_0 = arith.constant 0 : i32
    return %1, %c0_i32 : i32, i32
  }
  func.func @transform_2(%arg0: i32, %arg1: i32) -> (i32, i32) {
    %c0_i32 = arith.constant 0 : i32
    %c0_i32_0 = arith.constant 0 : i32
    return %c0_i32, %arg0 : i32, i32
  }
}

</mosaic_0001>

<llo_original>
// kernel: tpu_custom_call.1
$region0: #{tpu_custom_call.1}
  #allocation0 [shape = 'u32[]', space=smem, size = 0x4, offset = 0x4, fixed_abs, tag = 'smem constant byte address 0x4 - core index']
  #allocation1 [shape = 'u32[144,128]{1,0:T(1,128)}', space=vmem, size = 0x12000, scoped, tag = 'internal scratch']
  #allocation2 [shape = 'f32[8,128]{1,0:T(8,128)}', space=vmem, size = 0x1000, scoped, tag = 'scratch operand']
  %s0 = inlined_call_operand.hbm [shape: f32[3,8,128], index: 0, kind: input, shape index: {}]
  %s1 = inlined_call_operand.hbm [shape: f32[8,128], index: 1, kind: input, shape index: {}]
  %s2 = inlined_call_operand.hbm [shape: f32[1,128], index: 2, kind: output, shape index: {}]
  %s3 = sld [smem:[#allocation0]]
  $region34: #{tpu_custom_call.1} parent=0
    _
  %s5 = ssub.s32 1, %s3
  %s6 = scalar_select 0, %s5, %s3
  $region1: #{tpu_custom_call.1} parent=0
    #allocation3 [shape = 'u8[12288]{0}', space=vmem, size = 0x3000, scoped, tag = 'input window, operand 0, single buffered']
    #allocation4 [shape = 's32[1]{0}', space=sflag, size = 0x4, scoped, tag = 'scoped memory for tpu_custom_call.1']
    #allocation5 [shape = 's32[1]{0}', space=sflag, size = 0x4, scoped, tag = 'scoped memory for tpu_custom_call.1']
    #allocation6 [shape = 'u8[4096]{0}', space=vmem, size = 0x1000, scoped, tag = 'input window, operand 1, single buffered']
    #allocation7 [shape = 's32[1]{0}', space=sflag, size = 0x4, scoped, tag = 'scoped memory for tpu_custom_call.1']
    #allocation8 [shape = 'u8[512]{0}', space=vmem, size = 0x400, scoped, tag = 'output window, operand 0, single buffered']
    %7 = vsyncpa [#allocation4], 0
    %8 = vsyncpa [#allocation7], 0
    %9 = vsyncpa [#allocation5], 0
    // Predicated region
    $region2: #{tpu_custom_call.1} parent=1 // pred_check
      _
    $region3: #{tpu_custom_call.1} parent=1 // pred_check_branch
      %11 = sbr.rel (0) target = $region5
    $region4: #{tpu_custom_call.1} parent=1 // pred_region
      %s12 = sadd.s32 0, 0
      %s14 = ssub.s32 384, 384
      %15 = vsyncadd [#allocation4], %s14
      %s16 = smul.addr %s12, 128
      %s17 = scalar_lea.hbm %s0, %s16
      %s18 = sshll.u32 [#allocation3], 4
      %s19 = int_to_ptr.vmem [resolvable:$true] %s18
      %24 = dma.hbm_to_vmem [thread:$0]  %s17, 384, %s19, [#allocation4], 128, 128, 8
    $region5: #{tpu_custom_call.1} parent=1 // pred_fallthru
      _
    // Predicated region
    $region6: #{tpu_custom_call.1} parent=1 // pred_check
      _
    $region7: #{tpu_custom_call.1} parent=1 // pred_check_branch
      %26 = sbr.rel (0) target = $region9
    $region8: #{tpu_custom_call.1} parent=1 // pred_region
      %s27 = sadd.s32 0, 0
      %s29 = ssub.s32 128, 128
      %30 = vsyncadd [#allocation7], %s29
      %s31 = smul.addr %s27, 128
      %s32 = scalar_lea.hbm %s1, %s31
      %s34 = sshll.u32 [#allocation6], 4
      %s35 = int_to_ptr.vmem [resolvable:$true] %s34
      %37 = dma.hbm_to_vmem [thread:$0]  %s32, 128, %s35, [#allocation7]
    $region9: #{tpu_custom_call.1} parent=1 // pred_fallthru
      _
    // Predicated region
    $region10: #{tpu_custom_call.1} parent=1 // pred_check
      _
    $region11: #{tpu_custom_call.1} parent=1 // pred_check_branch
      %39 = sbr.rel (0) target = $region13
    $region12: #{tpu_custom_call.1} parent=1 // pred_region
      %40 = dma.done [#allocation4], 384
    $region13: #{tpu_custom_call.1} parent=1 // pred_fallthru
      _
    // Predicated region
    $region14: #{tpu_custom_call.1} parent=1 // pred_check
      _
    $region15: #{tpu_custom_call.1} parent=1 // pred_check_branch
      %42 = sbr.rel (0) target = $region17
    $region16: #{tpu_custom_call.1} parent=1 // pred_region
      %43 = dma.done [#allocation7], 128
    $region17: #{tpu_custom_call.1} parent=1 // pred_fallthru
      _
    %s44 = sadd.s32 0, 0
    %s45 = sadd.s32 0, 0
    %p46 = scmp.eq.s32.totalorder 0, 0
    // Predicated region
    $region18: #{tpu_custom_call.1} parent=1 // pred_check
      %p47 = pneg %p46
    $region19: #{tpu_custom_call.1} parent=1 // pred_check_branch
      %49 = sbr.rel (%p47) target = $region21
    $region20: #{tpu_custom_call.1} parent=1 // pred_region
      %50 = vst [vmem:[#allocation2] sm:$0xff] 0.0
    $region21: #{tpu_custom_call.1} parent=1 // pred_fallthru
      _
    %v51 = vld [vmem:[#allocation6] sm:$0xff]
    %v52 = vld [vmem:[#allocation3] sm:$0xff]
    %v53 = vsub.f32 %v51, %v52
    %v54 = vmul.f32 %v53, 0.1
    %v55 = vsub.f32 0.0, %v53
    %v56 = vmax.f32 %v55, 0.0
    %v57 = vadd.f32 %v54, %v56
    %v58 = vadd.f32 %v57, 0.0
    %s59 = scalar_lea.vmem [#allocation3], 8
    %v60 = vld [vmem:[%s59] sm:$0xff]
    %v61 = vsub.f32 %v51, %v60
    %v62 = vmul.f32 %v61, 0.5
    %v63 = vsub.f32 0.0, %v61
    %v64 = vmax.f32 %v63, 0.0
    %v65 = vadd.f32 %v62, %v64
    %v66 = vadd.f32 %v58, %v65
    %s67 = scalar_lea.vmem [#allocation3], 16
    %v68 = vld [vmem:[%s67] sm:$0xff]
    %v69 = vsub.f32 %v51, %v68
    %v70 = vmul.f32 %v69, 0.9
    %v71 = vsub.f32 0.0, %v69
    %v72 = vmax.f32 %v71, 0.0
    %v73 = vadd.f32 %v70, %v72
    %v74 = vadd.f32 %v66, %v73
    %v75 = vld [vmem:[#allocation2] sm:$0xff]
    %v76 = vadd.f32 %v75, %v74
    %77 = vst [vmem:[#allocation2] sm:$0xff] %v76
    // Predicated region
    $region22: #{tpu_custom_call.1} parent=1 // pred_check
      %p78 = pneg %p46
    $region23: #{tpu_custom_call.1} parent=1 // pred_check_branch
      %80 = sbr.rel (%p78) target = $region25
    $region24: #{tpu_custom_call.1} parent=1 // pred_region
      %v81 = vld [vmem:[#allocation2] sm:$0xff]
      %82 = vadd.xlane.f32.xlu0 %v81
      %v83 = vpop.xlane.xlu0 %82
      %v84 = vrot.slane %v83, 4
      %v85 = vadd.f32 %v83, %v84
      %v86 = vrot.slane %v85, 2
      %v87 = vadd.f32 %v85, %v86
      %v88 = vrot.slane %v87, 1
      %v89 = vadd.f32 %v87, %v88
      %s90 = vtos %v89
      %v91 = vstv %s90
      %92 = vst [vmem:[#allocation8] sm:$0x1] %v91
    $region25: #{tpu_custom_call.1} parent=1 // pred_fallthru
      _
    // Predicated region
    $region26: #{tpu_custom_call.1} parent=1 // pred_check
      _
    $region27: #{tpu_custom_call.1} parent=1 // pred_check_branch
      %94 = sbr.rel (0) target = $region29
    $region28: #{tpu_custom_call.1} parent=1 // pred_region
      %s96 = ssub.s32 16, 16
      %97 = vsyncadd [#allocation5], %s96
      %s99 = sshll.u32 [#allocation8], 4
      %s100 = int_to_ptr.vmem [resolvable:$true] %s99
      %102 = dma.vmem_to_hbm [thread:$0]  %s100, 16, %s2, [#allocation5]
    $region29: #{tpu_custom_call.1} parent=1 // pred_fallthru
      _
    // Predicated region
    $region30: #{tpu_custom_call.1} parent=1 // pred_check
      _
    $region31: #{tpu_custom_call.1} parent=1 // pred_check_branch
      %104 = sbr.rel (0) target = $region33
    $region32: #{tpu_custom_call.1} parent=1 // pred_region
      %105 = dma.done [#allocation5], 16
    $region33: #{tpu_custom_call.1} parent=1 // pred_fallthru
      _
    %106 = vsyncpa [#allocation4], 1
    %107 = vsyncpa [#allocation7], 1
    %108 = vsyncpa [#allocation5], 1

</llo_original>
